<compile_context>
chip_gen: v6e
topology: v6e:2x2x1
jax: 0.10.0
libtpu: 0.0.40
codegen_flags: <defaults>
</compile_context>

<pallas_src>
import functools

import jax
import jax.numpy as jnp
from jax.experimental import pallas as pl
from jax.experimental.pallas import tpu as pltpu


# ----------------------------------------------------------------------------
# Pallas kernel (NCW layout, one (batch, N-tile) per grid step):
#   hs = [w1 ; ws] @ x + [b1 ; bs]          (fused conv1 + shortcut)
#   h  = relu(hs[:C_mid])                   (conv1 branch; `la` == identity)
#   y  = w2 @ h + b2                        (conv2; drop_path == identity)
#   out = relu(y + hs[C_mid:])              (residual add + final ReLU)
# ----------------------------------------------------------------------------
def _bottleneck_kernel(x_ref, wcat_ref, bcat_ref, w2_ref, b2_ref, out_ref, *,
                       c_mid):
    x = x_ref[0]                                            # (C_in, TILE_N)

    # fused conv1 + shortcut (both consume x): one MXU matmul
    hs = jnp.dot(wcat_ref[...], x, preferred_element_type=jnp.float32)
    hs = hs + bcat_ref[...]                                 # (C_mid+C_out, TILE_N)

    h = jnp.maximum(hs[:c_mid, :], 0.0)                     # conv1 + BN1 + ReLU
    s = hs[c_mid:, :]                                       # shortcut + BN_s

    # local_aggregation treated as identity (see TODO at top of file)

    # conv2 + BN2 (folded); drop_path(p=0.0) == identity
    y = jnp.dot(w2_ref[...], h.astype(w2_ref.dtype),
                preferred_element_type=jnp.float32)
    y = y + b2_ref[...]                                     # (C_out, TILE_N)

    # residual add + final ReLU; lane-dense store (last dim = TILE_N >= 128)
    out_ref[0] = jnp.maximum(y + s, 0.0).astype(out_ref.dtype)


def _fold_bn(w, gamma, beta, mean, var, eps):
    """Fold BatchNorm1d (eval mode) into a preceding 1x1 conv (bias=False).

    w: (C_out, C_in) conv weight.  Returns (w_folded, bias_folded) with
    w_folded shape (C_out, C_in), ready for  w_folded @ x  in NCW layout.
    """
    scale = gamma / jnp.sqrt(var + eps)                     # (C_out,)
    w_f = w * scale[:, None]                                # (C_out, C_in)
    b_f = beta - mean * scale                               # (C_out,)
    return w_f, b_f


def _pick_tile_n(n, max_tile=1024):
    """Largest multiple of 128 that divides n (<= max_tile); fallback: n."""
    if n % 128 != 0:
        return n
    t = min(n, max_tile)
    t -= t % 128
    while n % t != 0:
        t -= 128
    return t


def bottleneck_forward(xyz, mask, features, params, eps=1e-5, tile_n=None):
    """features: (B, C_in, N) as in PyTorch.  Returns (xyz, mask, out) with
    out shaped (B, C_out, N)."""
    w1, b1 = _fold_bn(params["w1"], *params["bn1"], eps=eps)
    w2, b2 = _fold_bn(params["w2"], *params["bn2"], eps=eps)
    ws, bs = _fold_bn(params["ws"], *params["bns"], eps=eps)

    B, C_in, N = features.shape
    C_mid = w1.shape[0]
    C_out = w2.shape[0]

    # Fuse conv1 + shortcut weights/biases (they share the same input x).
    w_cat = jnp.concatenate([w1, ws], axis=0)               # (C_mid+C_out, C_in)
    b_cat = jnp.concatenate([b1, bs], axis=0)[:, None]      # (C_mid+C_out, 1)
    b2c = b2[:, None]                                       # (C_out, 1)

    if tile_n is None:
        tile_n = _pick_tile_n(N)
    grid = (B, N // tile_n)

    const = lambda b, n: (0, 0)                             # resident weights/biases

    kernel = functools.partial(_bottleneck_kernel, c_mid=C_mid)

    out = pl.pallas_call(
        kernel,
        out_shape=jax.ShapeDtypeStruct((B, C_out, N), features.dtype),
        grid_spec=pltpu.PrefetchScalarGridSpec(
            num_scalar_prefetch=0,
            grid=grid,
            in_specs=[
                pl.BlockSpec((1, C_in, tile_n), lambda b, n: (b, 0, n)),   # x
                pl.BlockSpec((C_mid + C_out, C_in), const),                # [w1;ws]
                pl.BlockSpec((C_mid + C_out, 1), const),                   # [b1;bs]
                pl.BlockSpec((C_out, C_mid), const),                       # w2
                pl.BlockSpec((C_out, 1), const),                           # b2
            ],
            out_specs=pl.BlockSpec((1, C_out, tile_n), lambda b, n: (b, 0, n)),
        ),
        compiler_params=pltpu.CompilerParams(
            dimension_semantics=("parallel", "parallel"),
            vmem_limit_bytes=48 * 1024 * 1024),
    )(features, w_cat, b_cat, w2, b2c)

    # downsample is None -> query_xyz = xyz, query_mask = mask
    return xyz, mask, out


# ----------------------------------------------------------------------------
# Pure-JAX reference (mirrors the PyTorch eval-mode forward) for validation.
# ----------------------------------------------------------------------------
def _reference(features, params, eps=1e-5):
    def conv_bn(x, w, bn):
        gamma, beta, mean, var = bn
        y = jnp.einsum("oc,bcn->bon", w, x)
        scale = (gamma / jnp.sqrt(var + eps))[None, :, None]
        return (y - mean[None, :, None]) * scale + beta[None, :, None]

    h = jax.nn.relu(conv_bn(features, params["w1"], params["bn1"]))
    y = conv_bn(h, params["w2"], params["bn2"])
    s = conv_bn(features, params["ws"], params["bns"])
    return jax.nn.relu(y + s)


if __name__ == "__main__":
    key = jax.random.PRNGKey(0)
    B, N = 2, 128
    in_channels, out_channels, bottleneck_ratio = 32, 64, 4
    C_mid = out_channels // bottleneck_ratio

    keys = jax.random.split(key, 16)
    params = {
        "w1": jax.random.normal(keys[0], (C_mid, in_channels), jnp.float32) * 0.1,
        "bn1": (jax.random.uniform(keys[1], (C_mid,), jnp.float32, 0.5, 1.5),
                jax.random.normal(keys[2], (C_mid,), jnp.float32) * 0.1,
                jax.random.normal(keys[3], (C_mid,), jnp.float32) * 0.1,
                jax.random.uniform(keys[4], (C_mid,), jnp.float32, 0.5, 1.5)),
        "w2": jax.random.normal(keys[5], (out_channels, C_mid), jnp.float32) * 0.1,
        "bn2": (jax.random.uniform(keys[6], (out_channels,), jnp.float32, 0.5, 1.5),
                jax.random.normal(keys[7], (out_channels,), jnp.float32) * 0.1,
                jax.random.normal(keys[8], (out_channels,), jnp.float32) * 0.1,
                jax.random.uniform(keys[9], (out_channels,), jnp.float32, 0.5, 1.5)),
        "ws": jax.random.normal(keys[10], (out_channels, in_channels), jnp.float32) * 0.1,
        "bns": (jax.random.uniform(keys[11], (out_channels,), jnp.float32, 0.5, 1.5),
                jax.random.normal(keys[12], (out_channels,), jnp.float32) * 0.1,
                jax.random.normal(keys[13], (out_channels,), jnp.float32) * 0.1,
                jax.random.uniform(keys[14], (out_channels,), jnp.float32, 0.5, 1.5)),
    }

    xyz = jax.random.normal(keys[15], (B, N, 3), jnp.float32)
    mask = jnp.ones((B, N), jnp.bool_)
    features = jax.random.normal(jax.random.PRNGKey(42),
                                 (B, in_channels, N), jnp.float32)

    q_xyz, q_mask, out = jax.block_until_ready(
        bottleneck_forward(xyz, mask, features, params))

    ref = _reference(features, params)
    assert out.shape == (B, out_channels, N), out.shape
    assert jnp.allclose(out, ref, atol=2e-4, rtol=2e-4), \
        float(jnp.max(jnp.abs(out - ref)))
    print("KERNEL_OK")
</pallas_src>

<mosaic_0001>
module attributes {stable_mosaic.version = 11 : i64} {
  func.func @_bottleneck_kernel(%arg0: i32, %arg1: i32, %arg2: memref<1x32x128xf32, #tpu.memory_space<vmem>>, %arg3: memref<80x32xf32, #tpu.memory_space<vmem>>, %arg4: memref<80x1xf32, #tpu.memory_space<vmem>>, %arg5: memref<64x16xf32, #tpu.memory_space<vmem>>, %arg6: memref<64x1xf32, #tpu.memory_space<vmem>>, %arg7: memref<1x64x128xf32, #tpu.memory_space<vmem>>) attributes {dimension_semantics = [#tpu.dimension_semantics<parallel>, #tpu.dimension_semantics<parallel>], iteration_bounds = array<i64: 2, 1>, scalar_prefetch = 0 : i64, scratch_operands = 0 : i64, tpu.core_type = #tpu.core_type<tc>, window_params = [{transform_indices = @transform_0, window_bounds = array<i64: 1, 32, 128>}, {pipeline_mode = #tpu.pipeline_mode<synchronous>, transform_indices = @transform_1, window_bounds = array<i64: 80, 32>}, {pipeline_mode = #tpu.pipeline_mode<synchronous>, transform_indices = @transform_2, window_bounds = array<i64: 80, 1>}, {pipeline_mode = #tpu.pipeline_mode<synchronous>, transform_indices = @transform_3, window_bounds = array<i64: 64, 16>}, {pipeline_mode = #tpu.pipeline_mode<synchronous>, transform_indices = @transform_4, window_bounds = array<i64: 64, 1>}, {transform_indices = @transform_5, window_bounds = array<i64: 1, 64, 128>}]} {
    %c0 = arith.constant 0 : index
    %c0_0 = arith.constant 0 : index
    %c0_1 = arith.constant 0 : index
    %0 = vector.load %arg2[%c0, %c0_0, %c0_1] : memref<1x32x128xf32, #tpu.memory_space<vmem>>, vector<1x32x128xf32>
    %1 = vector.shape_cast %0 : vector<1x32x128xf32> to vector<32x128xf32>
    %c0_2 = arith.constant 0 : index
    %c0_3 = arith.constant 0 : index
    %2 = vector.load %arg3[%c0_2, %c0_3] : memref<80x32xf32, #tpu.memory_space<vmem>>, vector<80x32xf32>
    %cst = arith.constant dense<0.000000e+00> : vector<80x128xf32>
    %3 = tpu.matmul %2, %1, %cst {dimension_numbers = #tpu.dot_dimension_numbers<[1], [0], [0], [1], [0, 0, 1, 1], [], []>} : vector<80x32xf32>, vector<32x128xf32>, vector<80x128xf32> -> vector<80x128xf32>
    %c0_4 = arith.constant 0 : index
    %c0_5 = arith.constant 0 : index
    %4 = vector.load %arg4[%c0_4, %c0_5] : memref<80x1xf32, #tpu.memory_space<vmem>>, vector<80x1xf32>
    %5 = vector.broadcast %4 : vector<80x1xf32> to vector<80x128xf32>
    %6 = arith.addf %3, %5 : vector<80x128xf32>
    %7 = vector.extract_strided_slice %6 {offsets = [0, 0], sizes = [16, 128], strides = [1, 1]} : vector<80x128xf32> to vector<16x128xf32>
    %cst_6 = arith.constant 0.000000e+00 : f32
    %8 = vector.broadcast %cst_6 : f32 to vector<16x128xf32>
    %9 = arith.maximumf %7, %8 : vector<16x128xf32>
    %10 = vector.extract_strided_slice %6 {offsets = [16, 0], sizes = [64, 128], strides = [1, 1]} : vector<80x128xf32> to vector<64x128xf32>
    %c0_7 = arith.constant 0 : index
    %c0_8 = arith.constant 0 : index
    %11 = vector.load %arg5[%c0_7, %c0_8] : memref<64x16xf32, #tpu.memory_space<vmem>>, vector<64x16xf32>
    %cst_9 = arith.constant dense<0.000000e+00> : vector<64x128xf32>
    %12 = tpu.matmul %11, %9, %cst_9 {dimension_numbers = #tpu.dot_dimension_numbers<[1], [0], [0], [1], [0, 0, 1, 1], [], []>} : vector<64x16xf32>, vector<16x128xf32>, vector<64x128xf32> -> vector<64x128xf32>
    %c0_10 = arith.constant 0 : index
    %c0_11 = arith.constant 0 : index
    %13 = vector.load %arg6[%c0_10, %c0_11] : memref<64x1xf32, #tpu.memory_space<vmem>>, vector<64x1xf32>
    %14 = vector.broadcast %13 : vector<64x1xf32> to vector<64x128xf32>
    %15 = arith.addf %12, %14 : vector<64x128xf32>
    %16 = arith.addf %15, %10 : vector<64x128xf32>
    %cst_12 = arith.constant 0.000000e+00 : f32
    %17 = vector.broadcast %cst_12 : f32 to vector<64x128xf32>
    %18 = arith.maximumf %16, %17 : vector<64x128xf32>
    %c0_13 = arith.constant 0 : index
    %c0_14 = arith.constant 0 : index
    %c0_15 = arith.constant 0 : index
    %19 = vector.load %arg7[%c0_13, %c0_14, %c0_15] : memref<1x64x128xf32, #tpu.memory_space<vmem>>, vector<1x64x128xf32>
    %20 = vector.shape_cast %19 : vector<1x64x128xf32> to vector<64x128xf32>
    %21 = vector.shape_cast %18 : vector<64x128xf32> to vector<1x64x128xf32>
    tpu.vector_store %arg7[%c0_13, %c0_14, %c0_15], %21 {strides = array<i32>} : memref<1x64x128xf32, #tpu.memory_space<vmem>>, vector<1x64x128xf32>,
    return
  }
  func.func @transform_0(%arg0: i32, %arg1: i32) -> (i32, i32, i32) {
    %c0_i32 = arith.constant 0 : i32
    %c0_i32_0 = arith.constant 0 : i32
    return %arg0, %c0_i32, %arg1 : i32, i32, i32
  }
  func.func @transform_1(%arg0: i32, %arg1: i32) -> (i32, i32) {
    %c0_i32 = arith.constant 0 : i32
    %c0_i32_0 = arith.constant 0 : i32
    %c0_i32_1 = arith.constant 0 : i32
    return %c0_i32, %c0_i32_0 : i32, i32
  }
  func.func @transform_2(%arg0: i32, %arg1: i32) -> (i32, i32) {
    %c0_i32 = arith.constant 0 : i32
    %c0_i32_0 = arith.constant 0 : i32
    %c0_i32_1 = arith.constant 0 : i32
    return %c0_i32, %c0_i32_0 : i32, i32
  }
  func.func @transform_3(%arg0: i32, %arg1: i32) -> (i32, i32) {
    %c0_i32 = arith.constant 0 : i32
    %c0_i32_0 = arith.constant 0 : i32
    %c0_i32_1 = arith.constant 0 : i32
    return %c0_i32, %c0_i32_0 : i32, i32
  }
  func.func @transform_4(%arg0: i32, %arg1: i32) -> (i32, i32) {
    %c0_i32 = arith.constant 0 : i32
    %c0_i32_0 = arith.constant 0 : i32
    %c0_i32_1 = arith.constant 0 : i32
    return %c0_i32, %c0_i32_0 : i32, i32
  }
  func.func @transform_5(%arg0: i32, %arg1: i32) -> (i32, i32, i32) {
    %c0_i32 = arith.constant 0 : i32
    %c0_i32_0 = arith.constant 0 : i32
    return %arg0, %c0_i32, %arg1 : i32, i32, i32
  }
}

</mosaic_0001>

<llo_original>
// kernel: tpu_custom_call.1
$region0: #{tpu_custom_call.1}
  #allocation0 [shape = 'u32[]', space=smem, size = 0x4, offset = 0x4, fixed_abs, tag = 'smem constant byte address 0x4 - core index']
  #allocation1 [shape = 'u32[144,128]{1,0:T(1,128)}', space=vmem, size = 0x12000, scoped, tag = 'internal scratch']
  %s0 = inlined_call_operand.vmem [shape: f32[2,32,128], index: 0, kind: input, shape index: {}]
  %s1 = inlined_call_operand.vmem [shape: f32[80,32], index: 1, kind: input, shape index: {}]
  %s2 = inlined_call_operand.vmem [shape: f32[80,1], index: 2, kind: input, shape index: {}]
  %s3 = inlined_call_operand.vmem [shape: f32[64,16], index: 3, kind: input, shape index: {}]
  %s4 = inlined_call_operand.vmem [shape: f32[64,1], index: 4, kind: input, shape index: {}]
  %s5 = inlined_call_operand.hbm [shape: f32[2,64,128], index: 5, kind: output, shape index: {}]
  %s6 = sld [smem:[#allocation0]]
  $region53: #{tpu_custom_call.1} parent=0
    _
  %s8 = ssub.s32 1, %s6
  %s9 = scalar_select 0, %s8, %s6
  $region1: #{tpu_custom_call.1} parent=0
    #allocation2 [shape = 'u8[65536]{0}', space=vmem, size = 0x10000, scoped, tag = 'output window, operand 0']
    #allocation3 [shape = 's32[2]{0}', space=sflag, size = 0x8, scoped, tag = 'scoped memory for tpu_custom_call.1']
    %10 = vsyncpa [#allocation3], 0
    %s11 = scalar_lea.sflag [#allocation3], 1
    %12 = vsyncpa %s11, 0
    loop: start=0, step=1, limit=4
    $region2: #{tpu_custom_call.1} parent=1 // loop_pre_header
      _
    $region3: #{tpu_custom_call.1} parent=1 // loop_header
      %s14 = sphi 0, %s18
      %p15 = scmp.ge.s32.totalorder %s14, 4
      %s21 = sphi 0, %s33
      %s22 = sphi 0, %s29
      %s23 = sphi 0, %s21
      %s24 = sphi 0, %s22
      %s25 = sphi 0, %s23
      %s26 = sphi 0, %s24
      %s38 = sphi 0, %s40
      %s41 = sphi 0, %s38
      %s42 = sphi 0, %s41
      %s58 = sphi 0, %s42
      %s62 = sphi 0, %s62
      %s64 = sphi 0, %s62
      %s65 = sphi 0, %s64
      %s79 = sphi 0, %s65
      %s83 = sphi 0, %s83
      %s85 = sphi 0, %s83
      %s86 = sphi 0, %s85
      %s100 = sphi 0, %s86
      %s104 = sphi 0, %s104
      %s106 = sphi 0, %s104
      %s107 = sphi 0, %s106
      %s121 = sphi 0, %s107
      %s125 = sphi 0, %s125
      %s127 = sphi 0, %s125
      %s128 = sphi 0, %s127
      %s142 = sphi 0, %s128
      %s150 = sphi 0, %s152
      %s153 = sphi 0, %s150
      %s154 = sphi 0, %s153
      %s170 = sphi 0, %s154
    $region4: #{tpu_custom_call.1} parent=1 // loop_header_branch
      %17 = sbr.rel (%p15) target = $region8
    $region5: #{tpu_custom_call.1} parent=1 // loop_body
      %s19 = ssub.s32 %s14, 1
      %s20 = ssub.s32 %s14, 2
      %s27 = sadd.s32 1, %s22
      %p28 = scmp.ge.s32.totalorder %s27, 1
      %s29 = scalar_select %p28, 0, %s27
      %s30 = sadd.s32 1, %s21
      %s31 = scalar_select %p28, %s30, %s21
      %p32 = scmp.ge.s32.totalorder %s31, 2
      %s33 = scalar_select %p32, 0, %s31
      %s34 = ssub.s32 %s21, %s33
      %s35 = ssub.s32 %s22, %s29
      %s36 = sor.u32 %s34, %s35
      %p37 = scmp.eq.s32.totalorder %s36, 0
      %s39 = sadd.s32 %s38, 1
      %s40 = scalar_select %p37, %s38, %s39
      %p43 = pneg %p37
      %p44 = scmp.eq.s32.totalorder %s14, 1
      %p45 = por %p43, %p44
      %p46 = scmp.ne.s32.totalorder %s38, %s41
      %p47 = scmp.eq.s32.totalorder %s14, 0
      %p48 = por %p46, %p47
      %p49 = scmp.ne.s32.totalorder %s38, %s41
      %p50 = scmp.eq.s32.totalorder %s19, 1
      %p51 = por %p49, %p50
      %p52 = scmp.ne.s32.totalorder %s41, %s42
      %p53 = scmp.eq.s32.totalorder %s19, 0
      %p54 = por %p52, %p53
      %p55 = scmp.ne.s32.totalorder %s41, %s42
      %p56 = scmp.eq.s32.totalorder %s20, 1
      %p57 = por %p55, %p56
      %p59 = scmp.ne.s32.totalorder %s42, %s58
      %p60 = scmp.eq.s32.totalorder %s20, 0
      %p61 = por %p59, %p60
      %s63 = sadd.s32 %s62, 1
      %p66 = scmp.eq.s32.totalorder %s14, 1
      %p67 = scmp.ne.s32.totalorder %s62, %s64
      %p68 = scmp.eq.s32.totalorder %s14, 0
      %p69 = por %p67, %p68
      %p70 = scmp.ne.s32.totalorder %s62, %s64
      %p71 = scmp.eq.s32.totalorder %s19, 1
      %p72 = por %p70, %p71
      %p73 = scmp.ne.s32.totalorder %s64, %s65
      %p74 = scmp.eq.s32.totalorder %s19, 0
      %p75 = por %p73, %p74
      %p76 = scmp.ne.s32.totalorder %s64, %s65
      %p77 = scmp.eq.s32.totalorder %s20, 1
      %p78 = por %p76, %p77
      %p80 = scmp.ne.s32.totalorder %s65, %s79
      %p81 = scmp.eq.s32.totalorder %s20, 0
      %p82 = por %p80, %p81
      %s84 = sadd.s32 %s83, 1
      %p87 = scmp.eq.s32.totalorder %s14, 1
      %p88 = scmp.ne.s32.totalorder %s83, %s85
      %p89 = scmp.eq.s32.totalorder %s14, 0
      %p90 = por %p88, %p89
      %p91 = scmp.ne.s32.totalorder %s83, %s85
      %p92 = scmp.eq.s32.totalorder %s19, 1
      %p93 = por %p91, %p92
      %p94 = scmp.ne.s32.totalorder %s85, %s86
      %p95 = scmp.eq.s32.totalorder %s19, 0
      %p96 = por %p94, %p95
      %p97 = scmp.ne.s32.totalorder %s85, %s86
      %p98 = scmp.eq.s32.totalorder %s20, 1
      %p99 = por %p97, %p98
      %p101 = scmp.ne.s32.totalorder %s86, %s100
      %p102 = scmp.eq.s32.totalorder %s20, 0
      %p103 = por %p101, %p102
      %s105 = sadd.s32 %s104, 1
      %p108 = scmp.eq.s32.totalorder %s14, 1
      %p109 = scmp.ne.s32.totalorder %s104, %s106
      %p110 = scmp.eq.s32.totalorder %s14, 0
      %p111 = por %p109, %p110
      %p112 = scmp.ne.s32.totalorder %s104, %s106
      %p113 = scmp.eq.s32.totalorder %s19, 1
      %p114 = por %p112, %p113
      %p115 = scmp.ne.s32.totalorder %s106, %s107
      %p116 = scmp.eq.s32.totalorder %s19, 0
      %p117 = por %p115, %p116
      %p118 = scmp.ne.s32.totalorder %s106, %s107
      %p119 = scmp.eq.s32.totalorder %s20, 1
      %p120 = por %p118, %p119
      %p122 = scmp.ne.s32.totalorder %s107, %s121
      %p123 = scmp.eq.s32.totalorder %s20, 0
      %p124 = por %p122, %p123
      %s126 = sadd.s32 %s125, 1
      %p129 = scmp.eq.s32.totalorder %s14, 1
      %p130 = scmp.ne.s32.totalorder %s125, %s127
      %p131 = scmp.eq.s32.totalorder %s14, 0
      %p132 = por %p130, %p131
      %p133 = scmp.ne.s32.totalorder %s125, %s127
      %p134 = scmp.eq.s32.totalorder %s19, 1
      %p135 = por %p133, %p134
      %p136 = scmp.ne.s32.totalorder %s127, %s128
      %p137 = scmp.eq.s32.totalorder %s19, 0
      %p138 = por %p136, %p137
      %p139 = scmp.ne.s32.totalorder %s127, %s128
      %p140 = scmp.eq.s32.totalorder %s20, 1
      %p141 = por %p139, %p140
      %p143 = scmp.ne.s32.totalorder %s128, %s142
      %p144 = scmp.eq.s32.totalorder %s20, 0
      %p145 = por %p143, %p144
      %s146 = ssub.s32 %s21, %s33
      %s147 = ssub.s32 %s22, %s29
      %s148 = sor.u32 %s146, %s147
      %p149 = scmp.eq.s32.totalorder %s148, 0
      %s151 = sadd.s32 %s150, 1
      %s152 = scalar_select %p149, %s150, %s151
      %p155 = pneg %p149
      %p156 = scmp.eq.s32.totalorder %s14, 1
      %p157 = por %p155, %p156
      %p158 = scmp.ne.s32.totalorder %s150, %s153
      %p159 = scmp.eq.s32.totalorder %s14, 0
      %p160 = por %p158, %p159
      %p161 = scmp.ne.s32.totalorder %s150, %s153
      %p162 = scmp.eq.s32.totalorder %s19, 1
      %p163 = por %p161, %p162
      %p164 = scmp.ne.s32.totalorder %s153, %s154
      %p165 = scmp.eq.s32.totalorder %s19, 0
      %p166 = por %p164, %p165
      %p167 = scmp.ne.s32.totalorder %s153, %s154
      %p168 = scmp.eq.s32.totalorder %s20, 1
      %p169 = por %p167, %p168
      %p171 = scmp.ne.s32.totalorder %s154, %s170
      %p172 = scmp.eq.s32.totalorder %s20, 0
      %p173 = por %p171, %p172
      %p174 = scmp.le.s32.totalorder 1, %s14
      %p175 = scmp.lt.s32.totalorder %s14, 3
      %p176 = pnand %p174, %p175
      %p177 = pneg %p176
      // Predicated region
      $region9: #{tpu_custom_call.1} parent=5 // pred_check
        _
      $region10: #{tpu_custom_call.1} parent=5 // pred_check_branch
        %179 = sbr.rel (%p176) target = $region12
      $region11: #{tpu_custom_call.1} parent=5 // pred_region
        %s180 = ssub.s32 %s14, 1
        // Predicated region
        $region13: #{tpu_custom_call.1} parent=11 // pred_check
          %p181 = pneg %p75
        $region14: #{tpu_custom_call.1} parent=11 // pred_check_branch
          %183 = sbr.rel (%p181) target = $region16
        $region15: #{tpu_custom_call.1} parent=11 // pred_region
          _
        $region16: #{tpu_custom_call.1} parent=11 // pred_fallthru
          _
        // Predicated region
        $region17: #{tpu_custom_call.1} parent=11 // pred_check
          %p184 = pneg %p96
        $region18: #{tpu_custom_call.1} parent=11 // pred_check_branch
          %186 = sbr.rel (%p184) target = $region20
        $region19: #{tpu_custom_call.1} parent=11 // pred_region
          _
        $region20: #{tpu_custom_call.1} parent=11 // pred_fallthru
          _
        // Predicated region
        $region21: #{tpu_custom_call.1} parent=11 // pred_check
          %p187 = pneg %p117
        $region22: #{tpu_custom_call.1} parent=11 // pred_check_branch
          %189 = sbr.rel (%p187) target = $region24
        $region23: #{tpu_custom_call.1} parent=11 // pred_region
          _
        $region24: #{tpu_custom_call.1} parent=11 // pred_fallthru
          _
        // Predicated region
        $region25: #{tpu_custom_call.1} parent=11 // pred_check
          %p190 = pneg %p138
        $region26: #{tpu_custom_call.1} parent=11 // pred_check_branch
          %192 = sbr.rel (%p190) target = $region28
        $region27: #{tpu_custom_call.1} parent=11 // pred_region
          _
        $region28: #{tpu_custom_call.1} parent=11 // pred_fallthru
          _
      $region12: #{tpu_custom_call.1} parent=5 // pred_fallthru
        _
      %p193 = scmp.lt.s32.totalorder %s14, 2
      // Predicated region
      $region29: #{tpu_custom_call.1} parent=5 // pred_check
        %p194 = pneg %p193
      $region30: #{tpu_custom_call.1} parent=5 // pred_check_branch
        %196 = sbr.rel (%p194) target = $region32
      $region31: #{tpu_custom_call.1} parent=5 // pred_region
        // Predicated region
        $region33: #{tpu_custom_call.1} parent=31 // pred_check
          %p197 = pneg %p48
        $region34: #{tpu_custom_call.1} parent=31 // pred_check_branch
          %199 = sbr.rel (%p197) target = $region36
        $region35: #{tpu_custom_call.1} parent=31 // pred_region
          %p200 = scmp.lt.s32.totalorder %s21, 1
          %s201 = scalar_select %p200, %s21, 1
          %p202 = scmp.lt.s32.totalorder %s22, 0
          %s203 = scalar_select %p202, %s22, 0
          %s204 = smul.addr %s201, 4
          %s205 = sadd.s32 %s203, %s204
          %s206 = smul.addr %s205, 8
          %s207 = scalar_lea.vmem %s0, %s206
        $region36: #{tpu_custom_call.1} parent=31 // pred_fallthru
          _
      $region32: #{tpu_custom_call.1} parent=5 // pred_fallthru
        _
      %p208 = scmp.le.s32.totalorder 1, %s14
      %p209 = scmp.lt.s32.totalorder %s14, 3
      %p210 = pnand %p208, %p209
      %p211 = pneg %p210
      // Predicated region
      $region37: #{tpu_custom_call.1} parent=5 // pred_check
        _
      $region38: #{tpu_custom_call.1} parent=5 // pred_check_branch
        %213 = sbr.rel (%p210) target = $region40
      $region39: #{tpu_custom_call.1} parent=5 // pred_region
        %s214 = ssub.s32 %s14, 1
        %p215 = scmp.lt.s32.totalorder %s23, 1
        %s216 = scalar_select %p215, %s23, 1
        %p217 = scmp.lt.s32.totalorder %s24, 0
        %s218 = scalar_select %p217, %s24, 0
        %s219 = smul.addr %s216, 4
        %s220 = sadd.s32 %s218, %s219
        %s221 = smul.addr %s220, 8
        %s222 = scalar_lea.vmem %s0, %s221
        %p223 = pneg %p54
        %p224 = pneg %p51
        %p225 = pneg %p75
        %p226 = pneg %p72
        %p227 = pneg %p96
        %p228 = pneg %p93
        %p229 = pneg %p117
        %p230 = pneg %p114
        %p231 = pneg %p138
        %p232 = pneg %p135
        %p233 = pneg %p166
        %p234 = pneg %p163
        %s235 = sand.u32 %s153, 1
        %s236 = scalar_lea.sflag [#allocation3], %s235
        %s237 = sand.u32 %s153, 1
        %s238 = smul.addr %s237, 64
        %s239 = scalar_lea.vmem [#allocation2], %s238
        %p240 = scmp.lt.s32.totalorder %s23, 1
        %s241 = scalar_select %p240, %s23, 1
        %p242 = scmp.lt.s32.totalorder %s24, 0
        %s243 = scalar_select %p242, %s24, 0
        %s244 = smul.addr %s241, 4
        %s245 = sadd.s32 %s243, %s244
        %s246 = smul.addr %s245, 8
        %s247 = scalar_lea.vmem %s0, %s246
        %v248 = vld [vmem:[%s247] sm:$0xff]
        %v249 = vld [vmem:[%s247 + $0x8] sm:$0xff]
        %v250 = vld [vmem:[%s247 + $0x10] sm:$0xff]
        %v251 = vld [vmem:[%s247 + $0x18] sm:$0xff]
        %v252 = vld [vmem:[%s1] sm:$0xff]
        %v253 = vld [vmem:[%s1 + $0x8] sm:$0xff]
        %v254 = vld [vmem:[%s1 + $0x10] sm:$0xff]
        %v255 = vld [vmem:[%s1 + $0x18] sm:$0xff]
        %v256 = vld [vmem:[%s1 + $0x20] sm:$0xff]
        %v257 = vld [vmem:[%s1 + $0x28] sm:$0xff]
        %v258 = vld [vmem:[%s1 + $0x30] sm:$0xff]
        %v259 = vld [vmem:[%s1 + $0x38] sm:$0xff]
        %v260 = vld [vmem:[%s1 + $0x40] sm:$0xff]
        %v261 = vld [vmem:[%s1 + $0x48] sm:$0xff]
        %v262 = vld [vmem:[%s2] sm:$0xff]
        %v263 = vld [vmem:[%s2 + $0x8] sm:$0xff]
        %v264 = vld [vmem:[%s2 + $0x10] sm:$0xff]
        %v265 = vld [vmem:[%s2 + $0x18] sm:$0xff]
        %v266 = vld [vmem:[%s2 + $0x20] sm:$0xff]
        %v267 = vld [vmem:[%s2 + $0x28] sm:$0xff]
        %v268 = vld [vmem:[%s2 + $0x30] sm:$0xff]
        %v269 = vld [vmem:[%s2 + $0x38] sm:$0xff]
        %v270 = vld [vmem:[%s2 + $0x40] sm:$0xff]
        %v271 = vld [vmem:[%s2 + $0x48] sm:$0xff]
        %273 = vset.pattern.permute.xlu0 0
        %274 = vperm.xlu0 %273, %v262
        %v275 = vpop.permute.xlu0 %274
        %278 = vset.pattern.permute.xlu0 0
        %279 = vperm.xlu0 %278, %v263
        %v280 = vpop.permute.xlu0 %279
        %283 = vset.pattern.permute.xlu0 0
        %284 = vperm.xlu0 %283, %v264
        %v285 = vpop.permute.xlu0 %284
        %288 = vset.pattern.permute.xlu0 0
        %289 = vperm.xlu0 %288, %v265
        %v290 = vpop.permute.xlu0 %289
        %293 = vset.pattern.permute.xlu0 0
        %294 = vperm.xlu0 %293, %v266
        %v295 = vpop.permute.xlu0 %294
        %298 = vset.pattern.permute.xlu0 0
        %299 = vperm.xlu0 %298, %v267
        %v300 = vpop.permute.xlu0 %299
        %303 = vset.pattern.permute.xlu0 0
        %304 = vperm.xlu0 %303, %v268
        %v305 = vpop.permute.xlu0 %304
        %308 = vset.pattern.permute.xlu0 0
        %309 = vperm.xlu0 %308, %v269
        %v310 = vpop.permute.xlu0 %309
        %313 = vset.pattern.permute.xlu0 0
        %314 = vperm.xlu0 %313, %v270
        %v315 = vpop.permute.xlu0 %314
        %318 = vset.pattern.permute.xlu0 0
        %319 = vperm.xlu0 %318, %v271
        %v320 = vpop.permute.xlu0 %319
        %vm322 = vcmask 261120
        %v324 = vsel %vm322, %v252, 0
        %v327 = vsel %vm322, %v253, 0
        %v330 = vsel %vm322, %v254, 0
        %v333 = vsel %vm322, %v255, 0
        %v336 = vsel %vm322, %v256, 0
        %v339 = vsel %vm322, %v257, 0
        %v342 = vsel %vm322, %v258, 0
        %v345 = vsel %vm322, %v259, 0
        %v348 = vsel %vm322, %v260, 0
        %v351 = vsel %vm322, %v261, 0
        %353 = vmatprep.subr.mxu0 0.0
        %354 = vmatpush1.msra.mxu0 0.0
        %355 = vmatprep.subr.mxu0 0.0
        %356 = vmatpush1.msra.mxu0 0.0
        %357 = vmatprep.subr.mxu0 0.0
        %358 = vmatpush1.msra.mxu0 0.0
        %359 = vmatprep.subr.mxu0 0.0
        %360 = vmatpush1.msra.mxu0 0.0
        %361 = vmatprep.subr.mxu0 0.0
        %362 = vmatpush1.msra.mxu0 0.0
        %363 = vmatprep.subr.mxu0 0.0
        %364 = vmatpush1.msra.mxu0 0.0
        %365 = vmatprep.subr.mxu0 0.0
        %366 = vmatpush1.msra.mxu0 0.0
        %367 = vmatprep.subr.mxu0 0.0
        %368 = vmatpush1.msra.mxu0 0.0
        %369 = vmatprep.subr.mxu0 0.0
        %370 = vmatpush1.msra.mxu0 0.0
        %371 = vmatprep.subr.mxu0 0.0
        %372 = vmatpush1.msra.mxu0 0.0
        %373 = vmatprep.subr.mxu0 0.0
        %374 = vmatpush1.msra.mxu0 0.0
        %375 = vmatprep.subr.mxu0 0.0
        %376 = vmatpush1.msra.mxu0 0.0
        %377 = vmatprep.subr.mxu0 0.0
        %378 = vmatpush1.msra.mxu0 %v251
        %379 = vmatprep.subr.mxu0 0.0
        %380 = vmatpush1.msra.mxu0 %v250
        %381 = vmatprep.subr.mxu0 0.0
        %382 = vmatpush1.msra.mxu0 %v249
        %383 = vmatprep.subr.mxu0 0.0
        %384 = vmatpush1.msra.mxu0 %v248
        %385 = vmatprep.subr.mxu0 0.0
        %386 = vmatpush2.msra.mxu0 0.0
        %387 = vmatprep.subr.mxu0 0.0
        %388 = vmatpush2.msra.mxu0 0.0
        %389 = vmatprep.subr.mxu0 0.0
        %390 = vmatpush2.msra.mxu0 0.0
        %391 = vmatprep.subr.mxu0 0.0
        %392 = vmatpush2.msra.mxu0 0.0
        %393 = vmatprep.subr.mxu0 0.0
        %394 = vmatpush2.msra.mxu0 0.0
        %395 = vmatprep.subr.mxu0 0.0
        %396 = vmatpush2.msra.mxu0 0.0
        %397 = vmatprep.subr.mxu0 0.0
        %398 = vmatpush2.msra.mxu0 0.0
        %399 = vmatprep.subr.mxu0 0.0
        %400 = vmatpush2.msra.mxu0 0.0
        %401 = vmatprep.subr.mxu0 0.0
        %402 = vmatpush2.msra.mxu0 0.0
        %403 = vmatprep.subr.mxu0 0.0
        %404 = vmatpush2.msra.mxu0 0.0
        %405 = vmatprep.subr.mxu0 0.0
        %406 = vmatpush2.msra.mxu0 0.0
        %407 = vmatprep.subr.mxu0 0.0
        %408 = vmatpush2.msra.mxu0 0.0
        %409 = vmatprep.subr.mxu0 0.0
        %410 = vmatpush2.msra.mxu0 0.0
        %411 = vmatprep.subr.mxu0 0.0
        %412 = vmatpush2.msra.mxu0 0.0
        %413 = vmatprep.subr.mxu0 0.0
        %414 = vmatpush2.msra.mxu0 0.0
        %415 = vmatprep.subr.mxu0 0.0
        %416 = vmatpush2.msra.mxu0 0.0
        %417 = vmatprep.mubr.f32.mxu0 0.0
        %418 = vmatmul.mubr.f32.gmra.mxu0 %v324
        %v419 = vpop.f32.mrf.mxu0
        %v420 = vadd.f32 %v275, %v419
        %v421 = vpop.f32.mrf.mxu0
        %422 = vmatprep.mubr.f32.mxu0 0.0
        %423 = vmatmul.mubr.f32.gmra.mxu0 %v327
        %v424 = vpop.f32.mrf.mxu0
        %v425 = vadd.f32 %v280, %v424
        %v426 = vpop.f32.mrf.mxu0
        %427 = vmatprep.mubr.f32.mxu0 0.0
        %428 = vmatmul.mubr.f32.gmra.mxu0 %v330
        %v429 = vpop.f32.mrf.mxu0
        %v430 = vadd.f32 %v285, %v429
        %v431 = vpop.f32.mrf.mxu0
        %432 = vmatprep.mubr.f32.mxu0 0.0
        %433 = vmatmul.mubr.f32.gmra.mxu0 %v333
        %v434 = vpop.f32.mrf.mxu0
        %v435 = vadd.f32 %v290, %v434
        %v436 = vpop.f32.mrf.mxu0
        %437 = vmatprep.mubr.f32.mxu0 0.0
        %438 = vmatmul.mubr.f32.gmra.mxu0 %v336
        %v439 = vpop.f32.mrf.mxu0
        %v440 = vadd.f32 %v295, %v439
        %v441 = vpop.f32.mrf.mxu0
        %442 = vmatprep.mubr.f32.mxu0 0.0
        %443 = vmatmul.mubr.f32.gmra.mxu0 %v339
        %v444 = vpop.f32.mrf.mxu0
        %v445 = vadd.f32 %v300, %v444
        %v446 = vpop.f32.mrf.mxu0
        %447 = vmatprep.mubr.f32.mxu0 0.0
        %448 = vmatmul.mubr.f32.gmra.mxu0 %v342
        %v449 = vpop.f32.mrf.mxu0
        %v450 = vadd.f32 %v305, %v449
        %v451 = vpop.f32.mrf.mxu0
        %452 = vmatprep.mubr.f32.mxu0 0.0
        %453 = vmatmul.mubr.f32.gmra.mxu0 %v345
        %v454 = vpop.f32.mrf.mxu0
        %v455 = vadd.f32 %v310, %v454
        %v456 = vpop.f32.mrf.mxu0
        %457 = vmatprep.mubr.f32.mxu0 0.0
        %458 = vmatmul.mubr.f32.gmra.mxu0 %v348
        %v459 = vpop.f32.mrf.mxu0
        %v460 = vadd.f32 %v315, %v459
        %v461 = vpop.f32.mrf.mxu0
        %462 = vmatprep.mubr.f32.mxu0 0.0
        %463 = vmatmul.mubr.f32.gmra.mxu0 %v351
        %v464 = vpop.f32.mrf.mxu0
        %v465 = vadd.f32 %v320, %v464
        %v466 = vpop.f32.mrf.mxu0
        %467 = vdwg.mxu0
        %v468 = vmax.f32 %v420, 0.0
        %v469 = vmax.f32 %v425, 0.0
        %v470 = vld [vmem:[%s3] sm:$0xff]
        %v471 = vld [vmem:[%s3 + $0x8] sm:$0xff]
        %v472 = vld [vmem:[%s3 + $0x10] sm:$0xff]
        %v473 = vld [vmem:[%s3 + $0x18] sm:$0xff]
        %v474 = vld [vmem:[%s3 + $0x20] sm:$0xff]
        %v475 = vld [vmem:[%s3 + $0x28] sm:$0xff]
        %v476 = vld [vmem:[%s3 + $0x30] sm:$0xff]
        %v477 = vld [vmem:[%s3 + $0x38] sm:$0xff]
        %v478 = vld [vmem:[%s4] sm:$0xff]
        %v479 = vld [vmem:[%s4 + $0x8] sm:$0xff]
        %v480 = vld [vmem:[%s4 + $0x10] sm:$0xff]
        %v481 = vld [vmem:[%s4 + $0x18] sm:$0xff]
        %v482 = vld [vmem:[%s4 + $0x20] sm:$0xff]
        %v483 = vld [vmem:[%s4 + $0x28] sm:$0xff]
        %v484 = vld [vmem:[%s4 + $0x30] sm:$0xff]
        %v485 = vld [vmem:[%s4 + $0x38] sm:$0xff]
        %487 = vset.pattern.permute.xlu0 0
        %488 = vperm.xlu0 %487, %v478
        %v489 = vpop.permute.xlu0 %488
        %492 = vset.pattern.permute.xlu0 0
        %493 = vperm.xlu0 %492, %v479
        %v494 = vpop.permute.xlu0 %493
        %497 = vset.pattern.permute.xlu0 0
        %498 = vperm.xlu0 %497, %v480
        %v499 = vpop.permute.xlu0 %498
        %502 = vset.pattern.permute.xlu0 0
        %503 = vperm.xlu0 %502, %v481
        %v504 = vpop.permute.xlu0 %503
        %507 = vset.pattern.permute.xlu0 0
        %508 = vperm.xlu0 %507, %v482
        %v509 = vpop.permute.xlu0 %508
        %512 = vset.pattern.permute.xlu0 0
        %513 = vperm.xlu0 %512, %v483
        %v514 = vpop.permute.xlu0 %513
        %517 = vset.pattern.permute.xlu0 0
        %518 = vperm.xlu0 %517, %v484
        %v519 = vpop.permute.xlu0 %518
        %522 = vset.pattern.permute.xlu0 0
        %523 = vperm.xlu0 %522, %v485
        %v524 = vpop.permute.xlu0 %523
        %vm526 = vcmask 130048
        %v528 = vsel %vm526, %v470, 0
        %v531 = vsel %vm526, %v471, 0
        %v534 = vsel %vm526, %v472, 0
        %v537 = vsel %vm526, %v473, 0
        %v540 = vsel %vm526, %v474, 0
        %v543 = vsel %vm526, %v475, 0
        %v546 = vsel %vm526, %v476, 0
        %v549 = vsel %vm526, %v477, 0
        %551 = vmatprep.subr.mxu0 0.0
        %552 = vmatpush1.msra.mxu0 0.0
        %553 = vmatprep.subr.mxu0 0.0
        %554 = vmatpush1.msra.mxu0 0.0
        %555 = vmatprep.subr.mxu0 0.0
        %556 = vmatpush1.msra.mxu0 0.0
        %557 = vmatprep.subr.mxu0 0.0
        %558 = vmatpush1.msra.mxu0 0.0
        %559 = vmatprep.subr.mxu0 0.0
        %560 = vmatpush1.msra.mxu0 0.0
        %561 = vmatprep.subr.mxu0 0.0
        %562 = vmatpush1.msra.mxu0 0.0
        %563 = vmatprep.subr.mxu0 0.0
        %564 = vmatpush1.msra.mxu0 0.0
        %565 = vmatprep.subr.mxu0 0.0
        %566 = vmatpush1.msra.mxu0 0.0
        %567 = vmatprep.subr.mxu0 0.0
        %568 = vmatpush1.msra.mxu0 0.0
        %569 = vmatprep.subr.mxu0 0.0
        %570 = vmatpush1.msra.mxu0 0.0
        %571 = vmatprep.subr.mxu0 0.0
        %572 = vmatpush1.msra.mxu0 0.0
        %573 = vmatprep.subr.mxu0 0.0
        %574 = vmatpush1.msra.mxu0 0.0
        %575 = vmatprep.subr.mxu0 0.0
        %576 = vmatpush1.msra.mxu0 0.0
        %577 = vmatprep.subr.mxu0 0.0
        %578 = vmatpush1.msra.mxu0 0.0
        %579 = vmatprep.subr.mxu0 0.0
        %580 = vmatpush1.msra.mxu0 %v469
        %581 = vmatprep.subr.mxu0 0.0
        %582 = vmatpush1.msra.mxu0 %v468
        %583 = vmatprep.subr.mxu0 0.0
        %584 = vmatpush2.msra.mxu0 0.0
        %585 = vmatprep.subr.mxu0 0.0
        %586 = vmatpush2.msra.mxu0 0.0
        %587 = vmatprep.subr.mxu0 0.0
        %588 = vmatpush2.msra.mxu0 0.0
        %589 = vmatprep.subr.mxu0 0.0
        %590 = vmatpush2.msra.mxu0 0.0
        %591 = vmatprep.subr.mxu0 0.0
        %592 = vmatpush2.msra.mxu0 0.0
        %593 = vmatprep.subr.mxu0 0.0
        %594 = vmatpush2.msra.mxu0 0.0
        %595 = vmatprep.subr.mxu0 0.0
        %596 = vmatpush2.msra.mxu0 0.0
        %597 = vmatprep.subr.mxu0 0.0
        %598 = vmatpush2.msra.mxu0 0.0
        %599 = vmatprep.subr.mxu0 0.0
        %600 = vmatpush2.msra.mxu0 0.0
        %601 = vmatprep.subr.mxu0 0.0
        %602 = vmatpush2.msra.mxu0 0.0
        %603 = vmatprep.subr.mxu0 0.0
        %604 = vmatpush2.msra.mxu0 0.0
        %605 = vmatprep.subr.mxu0 0.0
        %606 = vmatpush2.msra.mxu0 0.0
        %607 = vmatprep.subr.mxu0 0.0
        %608 = vmatpush2.msra.mxu0 0.0
        %609 = vmatprep.subr.mxu0 0.0
        %610 = vmatpush2.msra.mxu0 0.0
        %611 = vmatprep.subr.mxu0 0.0
        %612 = vmatpush2.msra.mxu0 0.0
        %613 = vmatprep.subr.mxu0 0.0
        %614 = vmatpush2.msra.mxu0 0.0
        %615 = vmatprep.mubr.f32.mxu0 0.0
        %616 = vmatmul.mubr.f32.gmra.mxu0 %v528
        %v617 = vpop.f32.mrf.mxu0
        %v618 = vadd.f32 %v489, %v617
        %v619 = vpop.f32.mrf.mxu0
        %620 = vmatprep.mubr.f32.mxu0 0.0
        %621 = vmatmul.mubr.f32.gmra.mxu0 %v531
        %v622 = vpop.f32.mrf.mxu0
        %v623 = vadd.f32 %v494, %v622
        %v624 = vpop.f32.mrf.mxu0
        %625 = vmatprep.mubr.f32.mxu0 0.0
        %626 = vmatmul.mubr.f32.gmra.mxu0 %v534
        %v627 = vpop.f32.mrf.mxu0
        %v628 = vadd.f32 %v499, %v627
        %v629 = vpop.f32.mrf.mxu0
        %630 = vmatprep.mubr.f32.mxu0 0.0
        %631 = vmatmul.mubr.f32.gmra.mxu0 %v537
        %v632 = vpop.f32.mrf.mxu0
        %v633 = vadd.f32 %v504, %v632
        %v634 = vpop.f32.mrf.mxu0
        %635 = vmatprep.mubr.f32.mxu0 0.0
        %636 = vmatmul.mubr.f32.gmra.mxu0 %v540
        %v637 = vpop.f32.mrf.mxu0
        %v638 = vadd.f32 %v509, %v637
        %v639 = vpop.f32.mrf.mxu0
        %640 = vmatprep.mubr.f32.mxu0 0.0
        %641 = vmatmul.mubr.f32.gmra.mxu0 %v543
        %v642 = vpop.f32.mrf.mxu0
        %v643 = vadd.f32 %v514, %v642
        %v644 = vpop.f32.mrf.mxu0
        %645 = vmatprep.mubr.f32.mxu0 0.0
        %646 = vmatmul.mubr.f32.gmra.mxu0 %v546
        %v647 = vpop.f32.mrf.mxu0
        %v648 = vadd.f32 %v519, %v647
        %v649 = vpop.f32.mrf.mxu0
        %650 = vmatprep.mubr.f32.mxu0 0.0
        %651 = vmatmul.mubr.f32.gmra.mxu0 %v549
        %v652 = vpop.f32.mrf.mxu0
        %v653 = vadd.f32 %v524, %v652
        %v654 = vpop.f32.mrf.mxu0
        %655 = vdwg.mxu0
        %v656 = vadd.f32 %v618, %v430
        %v657 = vadd.f32 %v623, %v435
        %v658 = vadd.f32 %v628, %v440
        %v659 = vadd.f32 %v633, %v445
        %v660 = vadd.f32 %v638, %v450
        %v661 = vadd.f32 %v643, %v455
        %v662 = vadd.f32 %v648, %v460
        %v663 = vadd.f32 %v653, %v465
        %v664 = vmax.f32 %v656, 0.0
        %v665 = vmax.f32 %v657, 0.0
        %v666 = vmax.f32 %v658, 0.0
        %v667 = vmax.f32 %v659, 0.0
        %v668 = vmax.f32 %v660, 0.0
        %v669 = vmax.f32 %v661, 0.0
        %v670 = vmax.f32 %v662, 0.0
        %v671 = vmax.f32 %v663, 0.0
        %672 = vst [vmem:[%s239] sm:$0xff] %v664
        %673 = vst [vmem:[%s239 + $0x8] sm:$0xff] %v665
        %674 = vst [vmem:[%s239 + $0x10] sm:$0xff] %v666
        %675 = vst [vmem:[%s239 + $0x18] sm:$0xff] %v667
        %676 = vst [vmem:[%s239 + $0x20] sm:$0xff] %v668
        %677 = vst [vmem:[%s239 + $0x28] sm:$0xff] %v669
        %678 = vst [vmem:[%s239 + $0x30] sm:$0xff] %v670
        %679 = vst [vmem:[%s239 + $0x38] sm:$0xff] %v671
        %s680 = sand.u32 %s153, 1
        %s681 = scalar_lea.sflag [#allocation3], %s680
        %s682 = sand.u32 %s153, 1
        %s683 = smul.addr %s682, 64
        %s684 = scalar_lea.vmem [#allocation2], %s683
        // Predicated region
        $region41: #{tpu_custom_call.1} parent=39 // pred_check
          %p685 = pneg %p163
        $region42: #{tpu_custom_call.1} parent=39 // pred_check_branch
          %687 = sbr.rel (%p685) target = $region44
        $region43: #{tpu_custom_call.1} parent=39 // pred_region
          %s689 = ssub.s32 1024, 1024
          %690 = vsyncadd %s681, %s689
          %s691 = smul.addr %s23, 8
          %s692 = sadd.s32 %s24, %s691
          %s693 = smul.addr %s692, 128
          %s694 = scalar_lea.hbm %s5, %s693
          %s695 = sshll.u32 %s684, 4
          %s696 = int_to_ptr.vmem [resolvable:$true] %s695
          %701 = dma.vmem_to_hbm [thread:$0]  %s696, 1024, %s694, %s681, 128, 128, 8
        $region44: #{tpu_custom_call.1} parent=39 // pred_fallthru
          _
      $region40: #{tpu_custom_call.1} parent=5 // pred_fallthru
        _
      %p702 = scmp.le.s32.totalorder 2, %s14
      // Predicated region
      $region45: #{tpu_custom_call.1} parent=5 // pred_check
        %p703 = pneg %p702
      $region46: #{tpu_custom_call.1} parent=5 // pred_check_branch
        %705 = sbr.rel (%p703) target = $region48
      $region47: #{tpu_custom_call.1} parent=5 // pred_region
        %s706 = ssub.s32 %s14, 2
        // Predicated region
        $region49: #{tpu_custom_call.1} parent=47 // pred_check
          %p707 = pneg %p169
        $region50: #{tpu_custom_call.1} parent=47 // pred_check_branch
          %709 = sbr.rel (%p707) target = $region52
        $region51: #{tpu_custom_call.1} parent=47 // pred_region
          %s710 = sand.u32 %s154, 1
          %s711 = scalar_lea.sflag [#allocation3], %s710
          %s712 = sand.u32 %s154, 1
          %s713 = smul.addr %s712, 64
          %s714 = scalar_lea.vmem [#allocation2], %s713
          %715 = dma.done %s711, 1024
        $region52: #{tpu_custom_call.1} parent=47 // pred_fallthru
          _
      $region48: #{tpu_custom_call.1} parent=5 // pred_fallthru
        _
    $region6: #{tpu_custom_call.1} parent=1 // loop_footer
      %s18 = sadd.s32 1, %s14
    $region7: #{tpu_custom_call.1} parent=1 // loop_footer_branch
      %13 = sbr.rel target = $region3
    $region8: #{tpu_custom_call.1} parent=1 // loop_exit
      _
    %716 = vsyncpa [#allocation3], 1
    %s717 = scalar_lea.sflag [#allocation3], 1
    %718 = vsyncpa %s717, 1

</llo_original>
